<compile_context>
chip_gen: v7x
topology: tpu7x:2x2x1
jax: 0.10.0
libtpu: 0.0.40
codegen_flags: <defaults>
</compile_context>

<pallas_src>
import functools
import math

import jax
import jax.numpy as jnp
from jax import lax
from jax.experimental import pallas as pl
from jax.experimental.pallas import tpu as pltpu

EPS = 1e-5
_MIB = 1024 * 1024


def _round_up(v, m):
    return ((v + m - 1) // m) * m


def _pad_to(a, shape):
    widths = [(0, t - s) for s, t in zip(a.shape, shape)]
    if all(w == (0, 0) for w in widths):
        return a
    return jnp.pad(a, widths)


def _bn_relu(z, gb, inv_n, out_dtype):
    """Training-mode BatchNorm1d (biased batch var, eps=1e-5) folded to scale/shift + ReLU.

    z: f32 pre-activation [N, K]; gb: f32 [2, K] (gamma row 0, beta row 1). Stats in f32.
    Trimmed form: sum & sum-of-squares reductions, var = E[z^2] - mean^2 (clamped), one
    fused z*scale + shift pass. Zero-padded gamma/beta keep padded columns exactly 0.
    """
    gamma = gb[0:1, :]
    beta = gb[1:2, :]
    mean = jnp.sum(z, axis=0, keepdims=True) * inv_n                # [1, K]
    ex2 = jnp.sum(z * z, axis=0, keepdims=True) * inv_n             # [1, K]
    var = jnp.maximum(ex2 - mean * mean, 0.0)                       # guard cancellation
    scale = gamma * lax.rsqrt(var + EPS)                            # [1, K] vector ops only
    shift = beta - mean * scale                                     # [1, K]
    return jnp.maximum(z * scale + shift, 0.0).astype(out_dtype)    # one wide [N, K] pass


def _sigmoid(z):
    # tanh form -> transcendental routed to the EUP slot instead of a VPU divide.
    return 0.5 * (jnp.tanh(0.5 * z) + 1.0)


def _mlp_fast_kernel(x_ref, w_ref, gb_ref, w_out_ref, b_out_ref, o_ref, *, n_blocks, inv_n):
    """Single grid step: everything resident, unrolled loop over layer blocks."""
    compute_dtype = x_ref.dtype

    def body(l, h):
        z = jnp.dot(h, w_ref[l], preferred_element_type=jnp.float32)
        return _bn_relu(z, gb_ref[l], inv_n, compute_dtype)

    h = lax.fori_loop(0, n_blocks, body, x_ref[...], unroll=True)
    z = jnp.dot(h, w_out_ref[...], preferred_element_type=jnp.float32) + b_out_ref[...]
    o_ref[...] = _sigmoid(z).astype(o_ref.dtype)


def _mlp_streamed_kernel(x_ref, w_ref, gb_ref, w_out_ref, b_out_ref, o_ref, h_ref, *, inv_n):
    """Grid axis = layer block. One (K, K) weight slab is streamed per step; the activation
    is carried across grid steps in the persistent VMEM scratch h_ref (all reads/writes go
    through the ref so ordering with the last-step output read is preserved)."""
    l = pl.program_id(0)
    last = pl.num_programs(0) - 1

    @pl.when(l == 0)
    def _():
        h_ref[...] = x_ref[...]          # x pre-padded to (N, K), pre-cast to compute dtype

    z = jnp.dot(h_ref[...], w_ref[0], preferred_element_type=jnp.float32)
    h_ref[...] = _bn_relu(z, gb_ref[l], inv_n, h_ref.dtype)

    @pl.when(l == last)
    def _():
        zo = jnp.dot(h_ref[...], w_out_ref[...],
                     preferred_element_type=jnp.float32) + b_out_ref[...]
        o_ref[...] = _sigmoid(zo).astype(o_ref.dtype)


def _vmem_limit_bytes():
    # Generation-aware VMEM limit: capacity minus headroom, clamped to a safe range
    # (~48 MiB on v7x's 64 MiB per-TC VMEM, ~96 MiB on v5e/v6e's 128 MiB).
    try:
        cap = int(pltpu.get_tpu_info().vmem_capacity_bytes)
    except Exception:
        cap = 64 * _MIB
    return int(min(max(cap - 16 * _MIB, 32 * _MIB), 96 * _MIB))


def mlp_forward(x, params, hidden_layers, *, compute_dtype=jnp.float32, force_stream=False):
    (w_in, _b_in, g_in, be_in, w_h, _b_h, g_h, be_h, w_out, b_out) = params
    n, in_feature = x.shape
    hidden_feature = w_in.shape[1]
    out_feature = w_out.shape[1]
    L = hidden_layers
    n_blocks = L + 1

    cd = jnp.dtype(compute_dtype)

    # Lane-dense padding (multiples of 128). K is the uniform "feature width" of the
    # layer-block stack so the first layer shares the same (K, K) slab shape.
    in_p = _round_up(in_feature, 128)
    h_p = _round_up(hidden_feature, 128)
    out_p = _round_up(out_feature, 128)
    K = max(in_p, h_p)

    # Layer-block weight stack (first layer + hidden layers), pre-BN biases dropped
    # (exactly cancelled by batch-stat BN).
    w_blocks = [_pad_to(w_in, (K, K))]
    for l in range(L):
        w_blocks.append(_pad_to(w_h[l], (K, K)))
    w_stack = jnp.stack(w_blocks, axis=0).astype(cd)                      # (L+1, K, K)

    # gamma/beta per block, zero-padded (keeps padded columns exactly 0), f32.
    gb_blocks = [_pad_to(jnp.concatenate([g_in, be_in], axis=0), (2, K))]
    for l in range(L):
        gb_blocks.append(_pad_to(jnp.concatenate([g_h[l], be_h[l]], axis=0), (2, K)))
    gb_stack = jnp.stack(gb_blocks, axis=0).astype(jnp.float32)           # (L+1, 2, K)

    x_p = _pad_to(x, (n, K)).astype(cd)
    w_out_p = _pad_to(w_out, (K, out_p)).astype(cd)
    b_out_p = _pad_to(b_out, (1, out_p)).astype(jnp.float32)

    inv_n = 1.0 / n
    vmem_limit = _vmem_limit_bytes()
    budget = vmem_limit - 2 * _MIB

    def nbytes(shape, dtype):
        return math.prod(shape) * jnp.dtype(dtype).itemsize

    operand_bytes = (nbytes((n, K), cd)
                     + nbytes((n_blocks, K, K), cd)
                     + nbytes((n_blocks, 2, K), jnp.float32)
                     + nbytes((K, out_p), cd)
                     + nbytes((1, out_p), jnp.float32)
                     + nbytes((n, out_p), jnp.float32))
    # 2x for pipeline buffers + f32 intermediates of the BN / matmul epilogue.
    fast_bytes = 2 * operand_bytes + 6 * nbytes((n, K), jnp.float32)
    use_fast = (not force_stream) and fast_bytes <= budget

    compiler_params = pltpu.CompilerParams(
        dimension_semantics=("arbitrary",),          # layer steps are sequential
        vmem_limit_bytes=vmem_limit,
    )
    out_shape = jax.ShapeDtypeStruct((n, out_p), jnp.float32)

    if use_fast:
        kernel = functools.partial(_mlp_fast_kernel, n_blocks=n_blocks, inv_n=inv_n)
        out_padded = pl.pallas_call(
            kernel,
            out_shape=out_shape,
            grid_spec=pltpu.PrefetchScalarGridSpec(
                num_scalar_prefetch=0,
                grid=(1,),
                in_specs=[
                    pl.BlockSpec((n, K), lambda i: (0, 0)),               # x
                    pl.BlockSpec((n_blocks, K, K), lambda i: (0, 0, 0)),  # all layer weights
                    pl.BlockSpec((n_blocks, 2, K), lambda i: (0, 0, 0)),  # all gamma/beta
                    pl.BlockSpec((K, out_p), lambda i: (0, 0)),           # w_out
                    pl.BlockSpec((1, out_p), lambda i: (0, 0)),           # b_out
                ],
                out_specs=pl.BlockSpec((n, out_p), lambda i: (0, 0)),
            ),
            compiler_params=compiler_params,
        )(x_p, w_stack, gb_stack, w_out_p, b_out_p)
    else:
        kernel = functools.partial(_mlp_streamed_kernel, inv_n=inv_n)
        out_padded = pl.pallas_call(
            kernel,
            out_shape=out_shape,
            grid_spec=pltpu.PrefetchScalarGridSpec(
                num_scalar_prefetch=0,
                grid=(n_blocks,),
                in_specs=[
                    pl.BlockSpec((n, K), lambda l: (0, 0)),               # x (used at step 0)
                    pl.BlockSpec((1, K, K), lambda l: (l, 0, 0)),         # layer weight, streamed
                    pl.BlockSpec((n_blocks, 2, K), lambda l: (0, 0, 0)),  # gamma/beta, resident
                    pl.BlockSpec((K, out_p), lambda l: (0, 0)),           # w_out
                    pl.BlockSpec((1, out_p), lambda l: (0, 0)),           # b_out
                ],
                out_specs=pl.BlockSpec((n, out_p), lambda l: (0, 0)),
                scratch_shapes=[pltpu.VMEM((n, K), cd)],                  # carried activation
            ),
            compiler_params=compiler_params,
        )(x_p, w_stack, gb_stack, w_out_p, b_out_p)

    return out_padded[:, :out_feature]


def init_params(key, in_feature, hidden_feature, hidden_layers, out_feature):
    # Torch-faithful init (pre-BN biases included; only the reference uses them — the
    # kernel drops them since batch-stat BN cancels them exactly).
    ks = jax.random.split(key, 6)
    scale_in = 1.0 / jnp.sqrt(in_feature)
    scale_h = 1.0 / jnp.sqrt(hidden_feature)
    # Linear weights stored as [in, out] (transpose of torch's [out, in]).
    w_in = jax.random.uniform(ks[0], (in_feature, hidden_feature), jnp.float32,
                              -scale_in, scale_in)
    b_in = jax.random.uniform(ks[1], (1, hidden_feature), jnp.float32,
                              -scale_in, scale_in)
    g_in = jnp.ones((1, hidden_feature), jnp.float32)
    be_in = jnp.zeros((1, hidden_feature), jnp.float32)

    Lw = max(hidden_layers, 1)
    w_h = jax.random.uniform(ks[2], (Lw, hidden_feature, hidden_feature), jnp.float32,
                             -scale_h, scale_h)
    b_h = jax.random.uniform(ks[3], (Lw, 1, hidden_feature), jnp.float32,
                             -scale_h, scale_h)
    g_h = jnp.ones((Lw, 1, hidden_feature), jnp.float32)
    be_h = jnp.zeros((Lw, 1, hidden_feature), jnp.float32)

    w_out = jax.random.uniform(ks[4], (hidden_feature, out_feature), jnp.float32,
                               -scale_h, scale_h)
    b_out = jax.random.uniform(ks[5], (1, out_feature), jnp.float32,
                               -scale_h, scale_h)
    return (w_in, b_in, g_in, be_in, w_h, b_h, g_h, be_h, w_out, b_out)


def mlp_reference(x, params, hidden_layers):
    # Faithful to the PyTorch module: biases everywhere, standard BN form, exact sigmoid.
    (w_in, b_in, g_in, be_in, w_h, b_h, g_h, be_h, w_out, b_out) = params

    def bn_relu(h, gamma, beta):
        mean = jnp.mean(h, axis=0, keepdims=True)
        var = jnp.mean((h - mean) ** 2, axis=0, keepdims=True)
        return jnp.maximum(gamma * (h - mean) / jnp.sqrt(var + EPS) + beta, 0.0)

    h = bn_relu(x @ w_in + b_in, g_in, be_in)
    for l in range(hidden_layers):
        h = bn_relu(h @ w_h[l] + b_h[l], g_h[l], be_h[l])
    return jax.nn.sigmoid(h @ w_out + b_out)


if __name__ == "__main__":
    in_feature, hidden_feature, hidden_layers, out_feature = 4, 32, 2, 3
    batch = 8

    key = jax.random.PRNGKey(0)
    kx, kp = jax.random.split(key)
    x = jax.random.normal(kx, (batch, in_feature), jnp.float32)
    params = init_params(kp, in_feature, hidden_feature, hidden_layers, out_feature)

    ref = mlp_reference(x, params, hidden_layers)

    # 1) f32, single-step residency fast path (the path small nets take automatically).
    out_fast = jax.block_until_ready(mlp_forward(x, params, hidden_layers))
    assert out_fast.shape == (batch, out_feature)
    assert jnp.allclose(out_fast, ref, atol=1e-4, rtol=1e-4), "fast path mismatch"

    # 2) f32, layer-streamed fallback path (forced), same tolerance.
    out_stream = jax.block_until_ready(
        mlp_forward(x, params, hidden_layers, force_stream=True))
    assert jnp.allclose(out_stream, ref, atol=1e-4, rtol=1e-4), "streamed path mismatch"

    # 3) bf16 weights/activations (f32 BN stats + f32 accumulation), checked against a
    #    reference that uses identically bf16-quantized weights/input.
    batch2, hidden2, layers2 = 64, 256, 2
    x2 = jax.random.normal(kx, (batch2, in_feature), jnp.float32)
    params2 = init_params(kp, in_feature, hidden2, layers2, out_feature)
    out_bf16 = jax.block_until_ready(
        mlp_forward(x2, params2, layers2, compute_dtype=jnp.bfloat16))
    q = lambda a: a.astype(jnp.bfloat16).astype(jnp.float32)
    params2_q = (q(params2[0]), params2[1], params2[2], params2[3],
                 q(params2[4]), params2[5], params2[6], params2[7],
                 q(params2[8]), params2[9])
    ref_bf16 = mlp_reference(q(x2), params2_q, layers2)
    assert out_bf16.shape == (batch2, out_feature)
    assert jnp.allclose(out_bf16, ref_bf16, atol=3e-2, rtol=3e-2), "bf16 path mismatch"

    print("KERNEL_OK")
</pallas_src>

<mosaic_0001>
module attributes {stable_mosaic.version = 11 : i64} {
  func.func @_mlp_fast_kernel(%arg0: i32, %arg1: memref<8x128xf32, #tpu.memory_space<vmem>>, %arg2: memref<3x128x128xf32, #tpu.memory_space<vmem>>, %arg3: memref<3x2x128xf32, #tpu.memory_space<vmem>>, %arg4: memref<128x128xf32, #tpu.memory_space<vmem>>, %arg5: memref<1x128xf32, #tpu.memory_space<vmem>>, %arg6: memref<8x128xf32, #tpu.memory_space<vmem>>) attributes {dimension_semantics = [#tpu.dimension_semantics<arbitrary>], iteration_bounds = array<i64: 1>, scalar_prefetch = 0 : i64, scratch_operands = 0 : i64, tpu.core_type = #tpu.core_type<tc>, window_params = [{pipeline_mode = #tpu.pipeline_mode<synchronous>, transform_indices = @transform_0, window_bounds = array<i64: 8, 128>}, {pipeline_mode = #tpu.pipeline_mode<synchronous>, transform_indices = @transform_1, window_bounds = array<i64: 3, 128, 128>}, {pipeline_mode = #tpu.pipeline_mode<synchronous>, transform_indices = @transform_2, window_bounds = array<i64: 3, 2, 128>}, {pipeline_mode = #tpu.pipeline_mode<synchronous>, transform_indices = @transform_3, window_bounds = array<i64: 128, 128>}, {pipeline_mode = #tpu.pipeline_mode<synchronous>, transform_indices = @transform_4, window_bounds = array<i64: 1, 128>}, {pipeline_mode = #tpu.pipeline_mode<synchronous>, transform_indices = @transform_5, window_bounds = array<i64: 8, 128>}]} {
    %c0 = arith.constant 0 : index
    %c0_0 = arith.constant 0 : index
    %0 = vector.load %arg1[%c0, %c0_0] : memref<8x128xf32, #tpu.memory_space<vmem>>, vector<8x128xf32>
    %c0_i32 = arith.constant 0 : i32
    %1 = arith.index_cast %c0_i32 : i32 to index
    %c0_1 = arith.constant 0 : index
    %c0_2 = arith.constant 0 : index
    %2 = vector.load %arg2[%1, %c0_1, %c0_2] : memref<3x128x128xf32, #tpu.memory_space<vmem>>, vector<1x128x128xf32>
    %3 = vector.shape_cast %2 : vector<1x128x128xf32> to vector<128x128xf32>
    %cst = arith.constant dense<0.000000e+00> : vector<8x128xf32>
    %4 = tpu.matmul %0, %3, %cst {dimension_numbers = #tpu.dot_dimension_numbers<[1], [0], [0], [1], [0, 0, 1, 1], [], []>} : vector<8x128xf32>, vector<128x128xf32>, vector<8x128xf32> -> vector<8x128xf32>
    %5 = arith.index_cast %c0_i32 : i32 to index
    %c0_3 = arith.constant 0 : index
    %c0_4 = arith.constant 0 : index
    %6 = vector.load %arg3[%5, %c0_3, %c0_4] : memref<3x2x128xf32, #tpu.memory_space<vmem>>, vector<1x2x128xf32>
    %7 = vector.shape_cast %6 : vector<1x2x128xf32> to vector<2x128xf32>
    %8 = vector.extract_strided_slice %7 {offsets = [0, 0], sizes = [1, 128], strides = [1, 1]} : vector<2x128xf32> to vector<1x128xf32>
    %9 = vector.extract_strided_slice %7 {offsets = [1, 0], sizes = [1, 128], strides = [1, 1]} : vector<2x128xf32> to vector<1x128xf32>
    %cst_5 = arith.constant dense<0.000000e+00> : vector<128xf32>
    %10 = vector.multi_reduction <add>, %4, %cst_5 [0] : vector<8x128xf32> to vector<128xf32>
    %11 = vector.shape_cast %10 : vector<128xf32> to vector<1x128xf32>
    %cst_6 = arith.constant 1.250000e-01 : f32
    %12 = vector.broadcast %cst_6 : f32 to vector<1x128xf32>
    %13 = arith.mulf %11, %12 : vector<1x128xf32>
    %14 = arith.mulf %4, %4 : vector<8x128xf32>
    %cst_7 = arith.constant dense<0.000000e+00> : vector<128xf32>
    %15 = vector.multi_reduction <add>, %14, %cst_7 [0] : vector<8x128xf32> to vector<128xf32>
    %16 = vector.shape_cast %15 : vector<128xf32> to vector<1x128xf32>
    %cst_8 = arith.constant 1.250000e-01 : f32
    %17 = vector.broadcast %cst_8 : f32 to vector<1x128xf32>
    %18 = arith.mulf %16, %17 : vector<1x128xf32>
    %19 = arith.mulf %13, %13 : vector<1x128xf32>
    %20 = arith.subf %18, %19 : vector<1x128xf32>
    %cst_9 = arith.constant 0.000000e+00 : f32
    %21 = vector.broadcast %cst_9 : f32 to vector<1x128xf32>
    %22 = arith.maximumf %20, %21 : vector<1x128xf32>
    %cst_10 = arith.constant 9.99999974E-6 : f32
    %23 = vector.broadcast %cst_10 : f32 to vector<1x128xf32>
    %24 = arith.addf %22, %23 : vector<1x128xf32>
    %25 = math.rsqrt %24 : vector<1x128xf32>
    %26 = arith.mulf %8, %25 : vector<1x128xf32>
    %27 = arith.mulf %13, %26 : vector<1x128xf32>
    %28 = arith.subf %9, %27 : vector<1x128xf32>
    %29 = vector.broadcast %26 : vector<1x128xf32> to vector<8x128xf32>
    %30 = arith.mulf %4, %29 : vector<8x128xf32>
    %31 = vector.broadcast %28 : vector<1x128xf32> to vector<8x128xf32>
    %32 = arith.addf %30, %31 : vector<8x128xf32>
    %cst_11 = arith.constant 0.000000e+00 : f32
    %33 = vector.broadcast %cst_11 : f32 to vector<8x128xf32>
    %34 = arith.maximumf %32, %33 : vector<8x128xf32>
    %c1_i32 = arith.constant 1 : i32
    %35 = arith.index_cast %c1_i32 : i32 to index
    %c0_12 = arith.constant 0 : index
    %c0_13 = arith.constant 0 : index
    %36 = vector.load %arg2[%35, %c0_12, %c0_13] : memref<3x128x128xf32, #tpu.memory_space<vmem>>, vector<1x128x128xf32>
    %37 = vector.shape_cast %36 : vector<1x128x128xf32> to vector<128x128xf32>
    %cst_14 = arith.constant dense<0.000000e+00> : vector<8x128xf32>
    %38 = tpu.matmul %34, %37, %cst_14 {dimension_numbers = #tpu.dot_dimension_numbers<[1], [0], [0], [1], [0, 0, 1, 1], [], []>} : vector<8x128xf32>, vector<128x128xf32>, vector<8x128xf32> -> vector<8x128xf32>
    %39 = arith.index_cast %c1_i32 : i32 to index
    %c0_15 = arith.constant 0 : index
    %c0_16 = arith.constant 0 : index
    %40 = vector.load %arg3[%39, %c0_15, %c0_16] : memref<3x2x128xf32, #tpu.memory_space<vmem>>, vector<1x2x128xf32>
    %41 = vector.shape_cast %40 : vector<1x2x128xf32> to vector<2x128xf32>
    %42 = vector.extract_strided_slice %41 {offsets = [0, 0], sizes = [1, 128], strides = [1, 1]} : vector<2x128xf32> to vector<1x128xf32>
    %43 = vector.extract_strided_slice %41 {offsets = [1, 0], sizes = [1, 128], strides = [1, 1]} : vector<2x128xf32> to vector<1x128xf32>
    %cst_17 = arith.constant dense<0.000000e+00> : vector<128xf32>
    %44 = vector.multi_reduction <add>, %38, %cst_17 [0] : vector<8x128xf32> to vector<128xf32>
    %45 = vector.shape_cast %44 : vector<128xf32> to vector<1x128xf32>
    %cst_18 = arith.constant 1.250000e-01 : f32
    %46 = vector.broadcast %cst_18 : f32 to vector<1x128xf32>
    %47 = arith.mulf %45, %46 : vector<1x128xf32>
    %48 = arith.mulf %38, %38 : vector<8x128xf32>
    %cst_19 = arith.constant dense<0.000000e+00> : vector<128xf32>
    %49 = vector.multi_reduction <add>, %48, %cst_19 [0] : vector<8x128xf32> to vector<128xf32>
    %50 = vector.shape_cast %49 : vector<128xf32> to vector<1x128xf32>
    %cst_20 = arith.constant 1.250000e-01 : f32
    %51 = vector.broadcast %cst_20 : f32 to vector<1x128xf32>
    %52 = arith.mulf %50, %51 : vector<1x128xf32>
    %53 = arith.mulf %47, %47 : vector<1x128xf32>
    %54 = arith.subf %52, %53 : vector<1x128xf32>
    %cst_21 = arith.constant 0.000000e+00 : f32
    %55 = vector.broadcast %cst_21 : f32 to vector<1x128xf32>
    %56 = arith.maximumf %54, %55 : vector<1x128xf32>
    %cst_22 = arith.constant 9.99999974E-6 : f32
    %57 = vector.broadcast %cst_22 : f32 to vector<1x128xf32>
    %58 = arith.addf %56, %57 : vector<1x128xf32>
    %59 = math.rsqrt %58 : vector<1x128xf32>
    %60 = arith.mulf %42, %59 : vector<1x128xf32>
    %61 = arith.mulf %47, %60 : vector<1x128xf32>
    %62 = arith.subf %43, %61 : vector<1x128xf32>
    %63 = vector.broadcast %60 : vector<1x128xf32> to vector<8x128xf32>
    %64 = arith.mulf %38, %63 : vector<8x128xf32>
    %65 = vector.broadcast %62 : vector<1x128xf32> to vector<8x128xf32>
    %66 = arith.addf %64, %65 : vector<8x128xf32>
    %cst_23 = arith.constant 0.000000e+00 : f32
    %67 = vector.broadcast %cst_23 : f32 to vector<8x128xf32>
    %68 = arith.maximumf %66, %67 : vector<8x128xf32>
    %c2_i32 = arith.constant 2 : i32
    %69 = arith.index_cast %c2_i32 : i32 to index
    %c0_24 = arith.constant 0 : index
    %c0_25 = arith.constant 0 : index
    %70 = vector.load %arg2[%69, %c0_24, %c0_25] : memref<3x128x128xf32, #tpu.memory_space<vmem>>, vector<1x128x128xf32>
    %71 = vector.shape_cast %70 : vector<1x128x128xf32> to vector<128x128xf32>
    %cst_26 = arith.constant dense<0.000000e+00> : vector<8x128xf32>
    %72 = tpu.matmul %68, %71, %cst_26 {dimension_numbers = #tpu.dot_dimension_numbers<[1], [0], [0], [1], [0, 0, 1, 1], [], []>} : vector<8x128xf32>, vector<128x128xf32>, vector<8x128xf32> -> vector<8x128xf32>
    %73 = arith.index_cast %c2_i32 : i32 to index
    %c0_27 = arith.constant 0 : index
    %c0_28 = arith.constant 0 : index
    %74 = vector.load %arg3[%73, %c0_27, %c0_28] : memref<3x2x128xf32, #tpu.memory_space<vmem>>, vector<1x2x128xf32>
    %75 = vector.shape_cast %74 : vector<1x2x128xf32> to vector<2x128xf32>
    %76 = vector.extract_strided_slice %75 {offsets = [0, 0], sizes = [1, 128], strides = [1, 1]} : vector<2x128xf32> to vector<1x128xf32>
    %77 = vector.extract_strided_slice %75 {offsets = [1, 0], sizes = [1, 128], strides = [1, 1]} : vector<2x128xf32> to vector<1x128xf32>
    %cst_29 = arith.constant dense<0.000000e+00> : vector<128xf32>
    %78 = vector.multi_reduction <add>, %72, %cst_29 [0] : vector<8x128xf32> to vector<128xf32>
    %79 = vector.shape_cast %78 : vector<128xf32> to vector<1x128xf32>
    %cst_30 = arith.constant 1.250000e-01 : f32
    %80 = vector.broadcast %cst_30 : f32 to vector<1x128xf32>
    %81 = arith.mulf %79, %80 : vector<1x128xf32>
    %82 = arith.mulf %72, %72 : vector<8x128xf32>
    %cst_31 = arith.constant dense<0.000000e+00> : vector<128xf32>
    %83 = vector.multi_reduction <add>, %82, %cst_31 [0] : vector<8x128xf32> to vector<128xf32>
    %84 = vector.shape_cast %83 : vector<128xf32> to vector<1x128xf32>
    %cst_32 = arith.constant 1.250000e-01 : f32
    %85 = vector.broadcast %cst_32 : f32 to vector<1x128xf32>
    %86 = arith.mulf %84, %85 : vector<1x128xf32>
    %87 = arith.mulf %81, %81 : vector<1x128xf32>
    %88 = arith.subf %86, %87 : vector<1x128xf32>
    %cst_33 = arith.constant 0.000000e+00 : f32
    %89 = vector.broadcast %cst_33 : f32 to vector<1x128xf32>
    %90 = arith.maximumf %88, %89 : vector<1x128xf32>
    %cst_34 = arith.constant 9.99999974E-6 : f32
    %91 = vector.broadcast %cst_34 : f32 to vector<1x128xf32>
    %92 = arith.addf %90, %91 : vector<1x128xf32>
    %93 = math.rsqrt %92 : vector<1x128xf32>
    %94 = arith.mulf %76, %93 : vector<1x128xf32>
    %95 = arith.mulf %81, %94 : vector<1x128xf32>
    %96 = arith.subf %77, %95 : vector<1x128xf32>
    %97 = vector.broadcast %94 : vector<1x128xf32> to vector<8x128xf32>
    %98 = arith.mulf %72, %97 : vector<8x128xf32>
    %99 = vector.broadcast %96 : vector<1x128xf32> to vector<8x128xf32>
    %100 = arith.addf %98, %99 : vector<8x128xf32>
    %cst_35 = arith.constant 0.000000e+00 : f32
    %101 = vector.broadcast %cst_35 : f32 to vector<8x128xf32>
    %102 = arith.maximumf %100, %101 : vector<8x128xf32>
    %c3_i32 = arith.constant 3 : i32
    %c0_36 = arith.constant 0 : index
    %c0_37 = arith.constant 0 : index
    %103 = vector.load %arg4[%c0_36, %c0_37] : memref<128x128xf32, #tpu.memory_space<vmem>>, vector<128x128xf32>
    %cst_38 = arith.constant dense<0.000000e+00> : vector<8x128xf32>
    %104 = tpu.matmul %102, %103, %cst_38 {dimension_numbers = #tpu.dot_dimension_numbers<[1], [0], [0], [1], [0, 0, 1, 1], [], []>} : vector<8x128xf32>, vector<128x128xf32>, vector<8x128xf32> -> vector<8x128xf32>
    %c0_39 = arith.constant 0 : index
    %c0_40 = arith.constant 0 : index
    %105 = vector.load %arg5[%c0_39, %c0_40] : memref<1x128xf32, #tpu.memory_space<vmem>>, vector<1x128xf32>
    %106 = vector.broadcast %105 : vector<1x128xf32> to vector<8x128xf32>
    %107 = arith.addf %104, %106 : vector<8x128xf32>
    %cst_41 = arith.constant 5.000000e-01 : f32
    %108 = vector.broadcast %cst_41 : f32 to vector<8x128xf32>
    %109 = arith.mulf %108, %107 : vector<8x128xf32>
    %110 = math.tanh %109 : vector<8x128xf32>
    %cst_42 = arith.constant 1.000000e+00 : f32
    %111 = vector.broadcast %cst_42 : f32 to vector<8x128xf32>
    %112 = arith.addf %110, %111 : vector<8x128xf32>
    %cst_43 = arith.constant 5.000000e-01 : f32
    %113 = vector.broadcast %cst_43 : f32 to vector<8x128xf32>
    %114 = arith.mulf %113, %112 : vector<8x128xf32>
    %c0_44 = arith.constant 0 : index
    %c0_45 = arith.constant 0 : index
    %115 = vector.load %arg6[%c0_44, %c0_45] : memref<8x128xf32, #tpu.memory_space<vmem>>, vector<8x128xf32>
    tpu.vector_store %arg6[%c0_44, %c0_45], %114 {strides = array<i32>} : memref<8x128xf32, #tpu.memory_space<vmem>>, vector<8x128xf32>,
    return
  }
  func.func @transform_0(%arg0: i32) -> (i32, i32) {
    %c0_i32 = arith.constant 0 : i32
    %c0_i32_0 = arith.constant 0 : i32
    %c0_i32_1 = arith.constant 0 : i32
    return %c0_i32, %c0_i32_0 : i32, i32
  }
  func.func @transform_1(%arg0: i32) -> (i32, i32, i32) {
    %c0_i32 = arith.constant 0 : i32
    %c0_i32_0 = arith.constant 0 : i32
    %c0_i32_1 = arith.constant 0 : i32
    %c0_i32_2 = arith.constant 0 : i32
    return %c0_i32, %c0_i32_0, %c0_i32_1 : i32, i32, i32
  }
  func.func @transform_2(%arg0: i32) -> (i32, i32, i32) {
    %c0_i32 = arith.constant 0 : i32
    %c0_i32_0 = arith.constant 0 : i32
    %c0_i32_1 = arith.constant 0 : i32
    %c0_i32_2 = arith.constant 0 : i32
    return %c0_i32, %c0_i32_0, %c0_i32_1 : i32, i32, i32
  }
  func.func @transform_3(%arg0: i32) -> (i32, i32) {
    %c0_i32 = arith.constant 0 : i32
    %c0_i32_0 = arith.constant 0 : i32
    %c0_i32_1 = arith.constant 0 : i32
    return %c0_i32, %c0_i32_0 : i32, i32
  }
  func.func @transform_4(%arg0: i32) -> (i32, i32) {
    %c0_i32 = arith.constant 0 : i32
    %c0_i32_0 = arith.constant 0 : i32
    %c0_i32_1 = arith.constant 0 : i32
    return %c0_i32, %c0_i32_0 : i32, i32
  }
  func.func @transform_5(%arg0: i32) -> (i32, i32) {
    %c0_i32 = arith.constant 0 : i32
    %c0_i32_0 = arith.constant 0 : i32
    %c0_i32_1 = arith.constant 0 : i32
    return %c0_i32, %c0_i32_0 : i32, i32
  }
}

</mosaic_0001>

<llo_original>
// kernel: tpu_custom_call.1
$region0: #{tpu_custom_call.1}
  #allocation0 [shape = 'u32[]', space=smem, size = 0x4, offset = 0x4, fixed_abs, tag = 'smem constant byte address 0x4 - core index']
  #allocation1 [shape = 'u32[144,128]{1,0:T(1,128)}', space=vmem, size = 0x12000, scoped, tag = 'internal scratch']
  %s0 = inlined_call_operand.hbm [shape: f32[8,128], index: 0, kind: input, shape index: {}]
  %s1 = inlined_call_operand.hbm [shape: f32[3,128,128], index: 1, kind: input, shape index: {}]
  %s2 = inlined_call_operand.vmem [shape: f32[3,2,128], index: 2, kind: input, shape index: {}]
  %s3 = inlined_call_operand.hbm [shape: f32[128,128], index: 3, kind: input, shape index: {}]
  %s4 = inlined_call_operand.vmem [shape: f32[1,128], index: 4, kind: input, shape index: {}]
  %s5 = inlined_call_operand.hbm [shape: f32[8,128], index: 5, kind: output, shape index: {}]
  %s6 = sld [smem:[#allocation0]]
  $region42: #{tpu_custom_call.1} parent=0
    _
  %s8 = ssub.s32 1, %s6
  %s9 = scalar_select 0, %s8, %s6
  $region1: #{tpu_custom_call.1} parent=0
    #allocation2 [shape = 'u8[4096]{0}', space=vmem, size = 0x1000, scoped, tag = 'input window, operand 0, single buffered']
    #allocation3 [shape = 's32[1]{0}', space=sflag, size = 0x4, scoped, tag = 'scoped memory for tpu_custom_call.1']
    #allocation4 [shape = 's32[1]{0}', space=sflag, size = 0x4, scoped, tag = 'scoped memory for tpu_custom_call.1']
    #allocation5 [shape = 'u8[196608]{0}', space=vmem, size = 0x30000, scoped, tag = 'input window, operand 1, single buffered']
    #allocation6 [shape = 's32[1]{0}', space=sflag, size = 0x4, scoped, tag = 'scoped memory for tpu_custom_call.1']
    #allocation7 [shape = 'u8[65536]{0}', space=vmem, size = 0x10000, scoped, tag = 'input window, operand 3, single buffered']
    #allocation8 [shape = 'u8[4096]{0}', space=vmem, size = 0x1000, scoped, tag = 'output window, operand 0, single buffered']
    %10 = vsyncpa [#allocation3], 0
    %11 = vsyncpa [#allocation6], 0
    %12 = vsyncpa [#allocation4], 0
    // Predicated region
    $region2: #{tpu_custom_call.1} parent=1 // pred_check
      _
    $region3: #{tpu_custom_call.1} parent=1 // pred_check_branch
      %14 = sbr.rel (0) target = $region5
    $region4: #{tpu_custom_call.1} parent=1 // pred_region
      %s16 = ssub.s32 128, 128
      %17 = vsyncadd [#allocation3], %s16
      %s19 = sshll.u32 [#allocation2], 4
      %s20 = int_to_ptr.vmem [resolvable:$true] %s19
      %22 = dma.hbm_to_vmem [thread:$0]  %s0, 128, %s20, [#allocation3]
    $region5: #{tpu_custom_call.1} parent=1 // pred_fallthru
      _
    // Predicated region
    $region6: #{tpu_custom_call.1} parent=1 // pred_check
      _
    $region7: #{tpu_custom_call.1} parent=1 // pred_check_branch
      %24 = sbr.rel (0) target = $region9
    $region8: #{tpu_custom_call.1} parent=1 // pred_region
      %s26 = ssub.s32 6144, 6144
      %27 = vsyncadd [#allocation6], %s26
      %s28 = sshll.u32 [#allocation5], 4
      %s29 = int_to_ptr.vmem [resolvable:$true] %s28
      %34 = dma.hbm_to_vmem [thread:$0]  %s1, 6144, %s29, [#allocation6], 128, 128, 8
    $region9: #{tpu_custom_call.1} parent=1 // pred_fallthru
      _
    // Predicated region
    $region10: #{tpu_custom_call.1} parent=1 // pred_check
      _
    $region11: #{tpu_custom_call.1} parent=1 // pred_check_branch
      %36 = sbr.rel (0) target = $region13
    $region12: #{tpu_custom_call.1} parent=1 // pred_region
      _
    $region13: #{tpu_custom_call.1} parent=1 // pred_fallthru
      _
    // Predicated region
    $region14: #{tpu_custom_call.1} parent=1 // pred_check
      _
    $region15: #{tpu_custom_call.1} parent=1 // pred_check_branch
      %38 = sbr.rel (0) target = $region17
    $region16: #{tpu_custom_call.1} parent=1 // pred_region
      %s40 = ssub.s32 2048, 2048
      %41 = vsyncadd [#allocation6], %s40
      %s42 = sshll.u32 [#allocation7], 4
      %s43 = int_to_ptr.vmem [resolvable:$true] %s42
      %48 = dma.hbm_to_vmem [thread:$0]  %s3, 2048, %s43, [#allocation6], 128, 128, 8
    $region17: #{tpu_custom_call.1} parent=1 // pred_fallthru
      _
    // Predicated region
    $region18: #{tpu_custom_call.1} parent=1 // pred_check
      _
    $region19: #{tpu_custom_call.1} parent=1 // pred_check_branch
      %50 = sbr.rel (0) target = $region21
    $region20: #{tpu_custom_call.1} parent=1 // pred_region
      _
    $region21: #{tpu_custom_call.1} parent=1 // pred_fallthru
      _
    // Predicated region
    $region22: #{tpu_custom_call.1} parent=1 // pred_check
      _
    $region23: #{tpu_custom_call.1} parent=1 // pred_check_branch
      %52 = sbr.rel (0) target = $region25
    $region24: #{tpu_custom_call.1} parent=1 // pred_region
      %53 = dma.done [#allocation3], 128
    $region25: #{tpu_custom_call.1} parent=1 // pred_fallthru
      _
    // Predicated region
    $region26: #{tpu_custom_call.1} parent=1 // pred_check
      _
    $region27: #{tpu_custom_call.1} parent=1 // pred_check_branch
      %55 = sbr.rel (0) target = $region29
    $region28: #{tpu_custom_call.1} parent=1 // pred_region
      %56 = dma.done [#allocation6], 6144
    $region29: #{tpu_custom_call.1} parent=1 // pred_fallthru
      _
    // Predicated region
    $region30: #{tpu_custom_call.1} parent=1 // pred_check
      _
    $region31: #{tpu_custom_call.1} parent=1 // pred_check_branch
      %58 = sbr.rel (0) target = $region33
    $region32: #{tpu_custom_call.1} parent=1 // pred_region
      %59 = dma.done [#allocation6], 2048
    $region33: #{tpu_custom_call.1} parent=1 // pred_fallthru
      _
    %v60 = vld [vmem:[#allocation2] sm:$0xff]
    %v61 = vld [vmem:[#allocation5] sm:$0xff]
    %v62 = vld [vmem:[#allocation5 + $0x8] sm:$0xff]
    %v63 = vld [vmem:[#allocation5 + $0x10] sm:$0xff]
    %v64 = vld [vmem:[#allocation5 + $0x18] sm:$0xff]
    %v65 = vld [vmem:[#allocation5 + $0x20] sm:$0xff]
    %v66 = vld [vmem:[#allocation5 + $0x28] sm:$0xff]
    %v67 = vld [vmem:[#allocation5 + $0x30] sm:$0xff]
    %v68 = vld [vmem:[#allocation5 + $0x38] sm:$0xff]
    %v69 = vld [vmem:[#allocation5 + $0x40] sm:$0xff]
    %v70 = vld [vmem:[#allocation5 + $0x48] sm:$0xff]
    %v71 = vld [vmem:[#allocation5 + $0x50] sm:$0xff]
    %v72 = vld [vmem:[#allocation5 + $0x58] sm:$0xff]
    %v73 = vld [vmem:[#allocation5 + $0x60] sm:$0xff]
    %v74 = vld [vmem:[#allocation5 + $0x68] sm:$0xff]
    %v75 = vld [vmem:[#allocation5 + $0x70] sm:$0xff]
    %v76 = vld [vmem:[#allocation5 + $0x78] sm:$0xff]
    %77 = vmatprep.subr.mxu0 0.0
    %78 = vmatpush1.msra.mxu0 %v61
    %79 = vmatprep.subr.mxu0 0.0
    %80 = vmatpush1.msra.mxu0 %v62
    %81 = vmatprep.subr.mxu0 0.0
    %82 = vmatpush1.msra.mxu0 %v63
    %83 = vmatprep.subr.mxu0 0.0
    %84 = vmatpush1.msra.mxu0 %v64
    %85 = vmatprep.subr.mxu0 0.0
    %86 = vmatpush1.msra.mxu0 %v65
    %87 = vmatprep.subr.mxu0 0.0
    %88 = vmatpush1.msra.mxu0 %v66
    %89 = vmatprep.subr.mxu0 0.0
    %90 = vmatpush1.msra.mxu0 %v67
    %91 = vmatprep.subr.mxu0 0.0
    %92 = vmatpush1.msra.mxu0 %v68
    %93 = vmatprep.subr.mxu0 0.0
    %94 = vmatpush1.msra.mxu0 %v69
    %95 = vmatprep.subr.mxu0 0.0
    %96 = vmatpush1.msra.mxu0 %v70
    %97 = vmatprep.subr.mxu0 0.0
    %98 = vmatpush1.msra.mxu0 %v71
    %99 = vmatprep.subr.mxu0 0.0
    %100 = vmatpush1.msra.mxu0 %v72
    %101 = vmatprep.subr.mxu0 0.0
    %102 = vmatpush1.msra.mxu0 %v73
    %103 = vmatprep.subr.mxu0 0.0
    %104 = vmatpush1.msra.mxu0 %v74
    %105 = vmatprep.subr.mxu0 0.0
    %106 = vmatpush1.msra.mxu0 %v75
    %107 = vmatprep.subr.mxu0 0.0
    %108 = vmatpush1.msra.mxu0 %v76
    %109 = vmatprep.subr.mxu0 0.0
    %110 = vmatpush1.msra.mxu0 0.0
    %111 = vmatprep.subr.mxu0 0.0
    %112 = vmatpush1.msra.mxu0 0.0
    %113 = vmatprep.subr.mxu0 0.0
    %114 = vmatpush1.msra.mxu0 0.0
    %115 = vmatprep.subr.mxu0 0.0
    %116 = vmatpush1.msra.mxu0 0.0
    %117 = vmatprep.subr.mxu0 0.0
    %118 = vmatpush1.msra.mxu0 0.0
    %119 = vmatprep.subr.mxu0 0.0
    %120 = vmatpush1.msra.mxu0 0.0
    %121 = vmatprep.subr.mxu0 0.0
    %122 = vmatpush1.msra.mxu0 0.0
    %123 = vmatprep.subr.mxu0 0.0
    %124 = vmatpush1.msra.mxu0 0.0
    %125 = vmatprep.subr.mxu0 0.0
    %126 = vmatpush1.msra.mxu0 0.0
    %127 = vmatprep.subr.mxu0 0.0
    %128 = vmatpush1.msra.mxu0 0.0
    %129 = vmatprep.subr.mxu0 0.0
    %130 = vmatpush1.msra.mxu0 0.0
    %131 = vmatprep.subr.mxu0 0.0
    %132 = vmatpush1.msra.mxu0 0.0
    %133 = vmatprep.subr.mxu0 0.0
    %134 = vmatpush1.msra.mxu0 0.0
    %135 = vmatprep.subr.mxu0 0.0
    %136 = vmatpush1.msra.mxu0 0.0
    %137 = vmatprep.subr.mxu0 0.0
    %138 = vmatpush1.msra.mxu0 0.0
    %139 = vmatprep.subr.mxu0 0.0
    %140 = vmatpush1.msra.mxu0 0.0
    %141 = vmatprep.mubr.f32.mxu0 0.0
    %142 = vmatmul.mubr.f32.gmra.mrb[0].mxu0 %v60
    %v143 = vpop.f32.mrb[0].mxu0
    %v144 = vadd.f32 0.0, %v143
    %v145 = vpop.f32.mrb[0].mxu0
    %146 = vdwg.mxu0
    %v147 = vld [vmem:[%s2] sm:$0x3]
    %v148 = vrot.slane %v144, 4
    %v149 = vadd.f32 %v144, %v148
    %v150 = vrot.slane %v149, 2
    %v151 = vadd.f32 %v149, %v150
    %v152 = vrot.slane %v151, 1
    %v153 = vadd.f32 %v151, %v152
    %v154 = vmul.f32 %v153, 0.125
    %v155 = vmul.f32 %v144, %v144
    %v156 = vrot.slane %v155, 4
    %v157 = vadd.f32 %v155, %v156
    %v158 = vrot.slane %v157, 2
    %v159 = vadd.f32 %v157, %v158
    %v160 = vrot.slane %v159, 1
    %v161 = vadd.f32 %v159, %v160
    %v162 = vmul.f32 %v161, 0.125
    %v163 = vmul.f32 %v154, %v154
    %v164 = vsub.f32 %v162, %v163
    %v165 = vmax.f32 %v164, 0.0
    %v166 = vadd.f32 %v165, 1e-05
    %v167 = vrsqrt.pop %v166
    %v168 = vmul.f32 %v147, %v167
    %v169 = vmul.f32 %v154, %v168
    %v171 = vrot.slane %v169, 7
    %v173 = vsub.f32 %v147, %v171
    %v174 = vlaneseq
    %v175 = vshrl.u32 %v174, 7
    %v176 = vsub.s32 0, %v175
    %v177 = vrot.slane %v168, %v176
    %v178 = vmul.f32 %v144, %v177
    %v179 = vlaneseq
    %v180 = vshrl.u32 %v179, 7
    %v181 = vsub.s32 1, %v180
    %v182 = vrot.slane %v173, %v181
    %v183 = vadd.f32 %v178, %v182
    %v184 = vmax.f32 %v183, 0.0
    %s185 = scalar_lea.vmem [#allocation5], 128
    %v186 = vld [vmem:[%s185] sm:$0xff]
    %v187 = vld [vmem:[%s185 + $0x8] sm:$0xff]
    %v188 = vld [vmem:[%s185 + $0x10] sm:$0xff]
    %v189 = vld [vmem:[%s185 + $0x18] sm:$0xff]
    %v190 = vld [vmem:[%s185 + $0x20] sm:$0xff]
    %v191 = vld [vmem:[%s185 + $0x28] sm:$0xff]
    %v192 = vld [vmem:[%s185 + $0x30] sm:$0xff]
    %v193 = vld [vmem:[%s185 + $0x38] sm:$0xff]
    %v194 = vld [vmem:[%s185 + $0x40] sm:$0xff]
    %v195 = vld [vmem:[%s185 + $0x48] sm:$0xff]
    %v196 = vld [vmem:[%s185 + $0x50] sm:$0xff]
    %v197 = vld [vmem:[%s185 + $0x58] sm:$0xff]
    %v198 = vld [vmem:[%s185 + $0x60] sm:$0xff]
    %v199 = vld [vmem:[%s185 + $0x68] sm:$0xff]
    %v200 = vld [vmem:[%s185 + $0x70] sm:$0xff]
    %v201 = vld [vmem:[%s185 + $0x78] sm:$0xff]
    %202 = vmatprep.subr.mxu0 0.0
    %203 = vmatpush1.msra.mxu0 %v186
    %204 = vmatprep.subr.mxu0 0.0
    %205 = vmatpush1.msra.mxu0 %v187
    %206 = vmatprep.subr.mxu0 0.0
    %207 = vmatpush1.msra.mxu0 %v188
    %208 = vmatprep.subr.mxu0 0.0
    %209 = vmatpush1.msra.mxu0 %v189
    %210 = vmatprep.subr.mxu0 0.0
    %211 = vmatpush1.msra.mxu0 %v190
    %212 = vmatprep.subr.mxu0 0.0
    %213 = vmatpush1.msra.mxu0 %v191
    %214 = vmatprep.subr.mxu0 0.0
    %215 = vmatpush1.msra.mxu0 %v192
    %216 = vmatprep.subr.mxu0 0.0
    %217 = vmatpush1.msra.mxu0 %v193
    %218 = vmatprep.subr.mxu0 0.0
    %219 = vmatpush1.msra.mxu0 %v194
    %220 = vmatprep.subr.mxu0 0.0
    %221 = vmatpush1.msra.mxu0 %v195
    %222 = vmatprep.subr.mxu0 0.0
    %223 = vmatpush1.msra.mxu0 %v196
    %224 = vmatprep.subr.mxu0 0.0
    %225 = vmatpush1.msra.mxu0 %v197
    %226 = vmatprep.subr.mxu0 0.0
    %227 = vmatpush1.msra.mxu0 %v198
    %228 = vmatprep.subr.mxu0 0.0
    %229 = vmatpush1.msra.mxu0 %v199
    %230 = vmatprep.subr.mxu0 0.0
    %231 = vmatpush1.msra.mxu0 %v200
    %232 = vmatprep.subr.mxu0 0.0
    %233 = vmatpush1.msra.mxu0 %v201
    %234 = vmatprep.subr.mxu0 0.0
    %235 = vmatpush1.msra.mxu0 0.0
    %236 = vmatprep.subr.mxu0 0.0
    %237 = vmatpush1.msra.mxu0 0.0
    %238 = vmatprep.subr.mxu0 0.0
    %239 = vmatpush1.msra.mxu0 0.0
    %240 = vmatprep.subr.mxu0 0.0
    %241 = vmatpush1.msra.mxu0 0.0
    %242 = vmatprep.subr.mxu0 0.0
    %243 = vmatpush1.msra.mxu0 0.0
    %244 = vmatprep.subr.mxu0 0.0
    %245 = vmatpush1.msra.mxu0 0.0
    %246 = vmatprep.subr.mxu0 0.0
    %247 = vmatpush1.msra.mxu0 0.0
    %248 = vmatprep.subr.mxu0 0.0
    %249 = vmatpush1.msra.mxu0 0.0
    %250 = vmatprep.subr.mxu0 0.0
    %251 = vmatpush1.msra.mxu0 0.0
    %252 = vmatprep.subr.mxu0 0.0
    %253 = vmatpush1.msra.mxu0 0.0
    %254 = vmatprep.subr.mxu0 0.0
    %255 = vmatpush1.msra.mxu0 0.0
    %256 = vmatprep.subr.mxu0 0.0
    %257 = vmatpush1.msra.mxu0 0.0
    %258 = vmatprep.subr.mxu0 0.0
    %259 = vmatpush1.msra.mxu0 0.0
    %260 = vmatprep.subr.mxu0 0.0
    %261 = vmatpush1.msra.mxu0 0.0
    %262 = vmatprep.subr.mxu0 0.0
    %263 = vmatpush1.msra.mxu0 0.0
    %264 = vmatprep.subr.mxu0 0.0
    %265 = vmatpush1.msra.mxu0 0.0
    %266 = vmatprep.mubr.f32.mxu0 0.0
    %267 = vmatmul.mubr.f32.gmra.mrb[0].mxu0 %v184
    %v268 = vpop.f32.mrb[0].mxu0
    %v269 = vadd.f32 0.0, %v268
    %v270 = vpop.f32.mrb[0].mxu0
    %271 = vdwg.mxu0
    %s272 = scalar_lea.vmem %s2, 2
    %v273 = vld [vmem:[%s272] sm:$0x3]
    %v274 = vrot.slane %v269, 4
    %v275 = vadd.f32 %v269, %v274
    %v276 = vrot.slane %v275, 2
    %v277 = vadd.f32 %v275, %v276
    %v278 = vrot.slane %v277, 1
    %v279 = vadd.f32 %v277, %v278
    %v280 = vmul.f32 %v279, 0.125
    %v281 = vmul.f32 %v269, %v269
    %v282 = vrot.slane %v281, 4
    %v283 = vadd.f32 %v281, %v282
    %v284 = vrot.slane %v283, 2
    %v285 = vadd.f32 %v283, %v284
    %v286 = vrot.slane %v285, 1
    %v287 = vadd.f32 %v285, %v286
    %v288 = vmul.f32 %v287, 0.125
    %v289 = vmul.f32 %v280, %v280
    %v290 = vsub.f32 %v288, %v289
    %v291 = vmax.f32 %v290, 0.0
    %v292 = vadd.f32 %v291, 1e-05
    %v293 = vrsqrt.pop %v292
    %v294 = vmul.f32 %v273, %v293
    %v295 = vmul.f32 %v280, %v294
    %v297 = vrot.slane %v295, 7
    %v299 = vsub.f32 %v273, %v297
    %v300 = vlaneseq
    %v301 = vshrl.u32 %v300, 7
    %v302 = vsub.s32 0, %v301
    %v303 = vrot.slane %v294, %v302
    %v304 = vmul.f32 %v269, %v303
    %v305 = vlaneseq
    %v306 = vshrl.u32 %v305, 7
    %v307 = vsub.s32 1, %v306
    %v308 = vrot.slane %v299, %v307
    %v309 = vadd.f32 %v304, %v308
    %v310 = vmax.f32 %v309, 0.0
    %s311 = scalar_lea.vmem [#allocation5], 256
    %v312 = vld [vmem:[%s311] sm:$0xff]
    %v313 = vld [vmem:[%s311 + $0x8] sm:$0xff]
    %v314 = vld [vmem:[%s311 + $0x10] sm:$0xff]
    %v315 = vld [vmem:[%s311 + $0x18] sm:$0xff]
    %v316 = vld [vmem:[%s311 + $0x20] sm:$0xff]
    %v317 = vld [vmem:[%s311 + $0x28] sm:$0xff]
    %v318 = vld [vmem:[%s311 + $0x30] sm:$0xff]
    %v319 = vld [vmem:[%s311 + $0x38] sm:$0xff]
    %v320 = vld [vmem:[%s311 + $0x40] sm:$0xff]
    %v321 = vld [vmem:[%s311 + $0x48] sm:$0xff]
    %v322 = vld [vmem:[%s311 + $0x50] sm:$0xff]
    %v323 = vld [vmem:[%s311 + $0x58] sm:$0xff]
    %v324 = vld [vmem:[%s311 + $0x60] sm:$0xff]
    %v325 = vld [vmem:[%s311 + $0x68] sm:$0xff]
    %v326 = vld [vmem:[%s311 + $0x70] sm:$0xff]
    %v327 = vld [vmem:[%s311 + $0x78] sm:$0xff]
    %328 = vmatprep.subr.mxu0 0.0
    %329 = vmatpush1.msra.mxu0 %v312
    %330 = vmatprep.subr.mxu0 0.0
    %331 = vmatpush1.msra.mxu0 %v313
    %332 = vmatprep.subr.mxu0 0.0
    %333 = vmatpush1.msra.mxu0 %v314
    %334 = vmatprep.subr.mxu0 0.0
    %335 = vmatpush1.msra.mxu0 %v315
    %336 = vmatprep.subr.mxu0 0.0
    %337 = vmatpush1.msra.mxu0 %v316
    %338 = vmatprep.subr.mxu0 0.0
    %339 = vmatpush1.msra.mxu0 %v317
    %340 = vmatprep.subr.mxu0 0.0
    %341 = vmatpush1.msra.mxu0 %v318
    %342 = vmatprep.subr.mxu0 0.0
    %343 = vmatpush1.msra.mxu0 %v319
    %344 = vmatprep.subr.mxu0 0.0
    %345 = vmatpush1.msra.mxu0 %v320
    %346 = vmatprep.subr.mxu0 0.0
    %347 = vmatpush1.msra.mxu0 %v321
    %348 = vmatprep.subr.mxu0 0.0
    %349 = vmatpush1.msra.mxu0 %v322
    %350 = vmatprep.subr.mxu0 0.0
    %351 = vmatpush1.msra.mxu0 %v323
    %352 = vmatprep.subr.mxu0 0.0
    %353 = vmatpush1.msra.mxu0 %v324
    %354 = vmatprep.subr.mxu0 0.0
    %355 = vmatpush1.msra.mxu0 %v325
    %356 = vmatprep.subr.mxu0 0.0
    %357 = vmatpush1.msra.mxu0 %v326
    %358 = vmatprep.subr.mxu0 0.0
    %359 = vmatpush1.msra.mxu0 %v327
    %360 = vmatprep.subr.mxu0 0.0
    %361 = vmatpush1.msra.mxu0 0.0
    %362 = vmatprep.subr.mxu0 0.0
    %363 = vmatpush1.msra.mxu0 0.0
    %364 = vmatprep.subr.mxu0 0.0
    %365 = vmatpush1.msra.mxu0 0.0
    %366 = vmatprep.subr.mxu0 0.0
    %367 = vmatpush1.msra.mxu0 0.0
    %368 = vmatprep.subr.mxu0 0.0
    %369 = vmatpush1.msra.mxu0 0.0
    %370 = vmatprep.subr.mxu0 0.0
    %371 = vmatpush1.msra.mxu0 0.0
    %372 = vmatprep.subr.mxu0 0.0
    %373 = vmatpush1.msra.mxu0 0.0
    %374 = vmatprep.subr.mxu0 0.0
    %375 = vmatpush1.msra.mxu0 0.0
    %376 = vmatprep.subr.mxu0 0.0
    %377 = vmatpush1.msra.mxu0 0.0
    %378 = vmatprep.subr.mxu0 0.0
    %379 = vmatpush1.msra.mxu0 0.0
    %380 = vmatprep.subr.mxu0 0.0
    %381 = vmatpush1.msra.mxu0 0.0
    %382 = vmatprep.subr.mxu0 0.0
    %383 = vmatpush1.msra.mxu0 0.0
    %384 = vmatprep.subr.mxu0 0.0
    %385 = vmatpush1.msra.mxu0 0.0
    %386 = vmatprep.subr.mxu0 0.0
    %387 = vmatpush1.msra.mxu0 0.0
    %388 = vmatprep.subr.mxu0 0.0
    %389 = vmatpush1.msra.mxu0 0.0
    %390 = vmatprep.subr.mxu0 0.0
    %391 = vmatpush1.msra.mxu0 0.0
    %392 = vmatprep.mubr.f32.mxu0 0.0
    %393 = vmatmul.mubr.f32.gmra.mrb[0].mxu0 %v310
    %v394 = vpop.f32.mrb[0].mxu0
    %v395 = vadd.f32 0.0, %v394
    %v396 = vpop.f32.mrb[0].mxu0
    %397 = vdwg.mxu0
    %s398 = scalar_lea.vmem %s2, 4
    %v399 = vld [vmem:[%s398] sm:$0x3]
    %v400 = vrot.slane %v395, 4
    %v401 = vadd.f32 %v395, %v400
    %v402 = vrot.slane %v401, 2
    %v403 = vadd.f32 %v401, %v402
    %v404 = vrot.slane %v403, 1
    %v405 = vadd.f32 %v403, %v404
    %v406 = vmul.f32 %v405, 0.125
    %v407 = vmul.f32 %v395, %v395
    %v408 = vrot.slane %v407, 4
    %v409 = vadd.f32 %v407, %v408
    %v410 = vrot.slane %v409, 2
    %v411 = vadd.f32 %v409, %v410
    %v412 = vrot.slane %v411, 1
    %v413 = vadd.f32 %v411, %v412
    %v414 = vmul.f32 %v413, 0.125
    %v415 = vmul.f32 %v406, %v406
    %v416 = vsub.f32 %v414, %v415
    %v417 = vmax.f32 %v416, 0.0
    %v418 = vadd.f32 %v417, 1e-05
    %v419 = vrsqrt.pop %v418
    %v420 = vmul.f32 %v399, %v419
    %v421 = vmul.f32 %v406, %v420
    %v423 = vrot.slane %v421, 7
    %v425 = vsub.f32 %v399, %v423
    %v426 = vlaneseq
    %v427 = vshrl.u32 %v426, 7
    %v428 = vsub.s32 0, %v427
    %v429 = vrot.slane %v420, %v428
    %v430 = vmul.f32 %v395, %v429
    %v431 = vlaneseq
    %v432 = vshrl.u32 %v431, 7
    %v433 = vsub.s32 1, %v432
    %v434 = vrot.slane %v425, %v433
    %v435 = vadd.f32 %v430, %v434
    %v436 = vmax.f32 %v435, 0.0
    %v437 = vld [vmem:[#allocation7] sm:$0xff]
    %v438 = vld [vmem:[#allocation7 + $0x8] sm:$0xff]
    %v439 = vld [vmem:[#allocation7 + $0x10] sm:$0xff]
    %v440 = vld [vmem:[#allocation7 + $0x18] sm:$0xff]
    %v441 = vld [vmem:[#allocation7 + $0x20] sm:$0xff]
    %v442 = vld [vmem:[#allocation7 + $0x28] sm:$0xff]
    %v443 = vld [vmem:[#allocation7 + $0x30] sm:$0xff]
    %v444 = vld [vmem:[#allocation7 + $0x38] sm:$0xff]
    %v445 = vld [vmem:[#allocation7 + $0x40] sm:$0xff]
    %v446 = vld [vmem:[#allocation7 + $0x48] sm:$0xff]
    %v447 = vld [vmem:[#allocation7 + $0x50] sm:$0xff]
    %v448 = vld [vmem:[#allocation7 + $0x58] sm:$0xff]
    %v449 = vld [vmem:[#allocation7 + $0x60] sm:$0xff]
    %v450 = vld [vmem:[#allocation7 + $0x68] sm:$0xff]
    %v451 = vld [vmem:[#allocation7 + $0x70] sm:$0xff]
    %v452 = vld [vmem:[#allocation7 + $0x78] sm:$0xff]
    %v453 = vld [vmem:[%s4] sm:$0x1]
    %v455 = vlaneseq
    %v456 = vshrl.u32 %v455, 7
    %v457 = vsub.s32 0, %v456
    %v458 = vrot.slane %v453, %v457
    %460 = vmatprep.subr.mxu0 0.0
    %461 = vmatpush1.msra.mxu0 %v437
    %462 = vmatprep.subr.mxu0 0.0
    %463 = vmatpush1.msra.mxu0 %v438
    %464 = vmatprep.subr.mxu0 0.0
    %465 = vmatpush1.msra.mxu0 %v439
    %466 = vmatprep.subr.mxu0 0.0
    %467 = vmatpush1.msra.mxu0 %v440
    %468 = vmatprep.subr.mxu0 0.0
    %469 = vmatpush1.msra.mxu0 %v441
    %470 = vmatprep.subr.mxu0 0.0
    %471 = vmatpush1.msra.mxu0 %v442
    %472 = vmatprep.subr.mxu0 0.0
    %473 = vmatpush1.msra.mxu0 %v443
    %474 = vmatprep.subr.mxu0 0.0
    %475 = vmatpush1.msra.mxu0 %v444
    %476 = vmatprep.subr.mxu0 0.0
    %477 = vmatpush1.msra.mxu0 %v445
    %478 = vmatprep.subr.mxu0 0.0
    %479 = vmatpush1.msra.mxu0 %v446
    %480 = vmatprep.subr.mxu0 0.0
    %481 = vmatpush1.msra.mxu0 %v447
    %482 = vmatprep.subr.mxu0 0.0
    %483 = vmatpush1.msra.mxu0 %v448
    %484 = vmatprep.subr.mxu0 0.0
    %485 = vmatpush1.msra.mxu0 %v449
    %486 = vmatprep.subr.mxu0 0.0
    %487 = vmatpush1.msra.mxu0 %v450
    %488 = vmatprep.subr.mxu0 0.0
    %489 = vmatpush1.msra.mxu0 %v451
    %490 = vmatprep.subr.mxu0 0.0
    %491 = vmatpush1.msra.mxu0 %v452
    %492 = vmatprep.subr.mxu0 0.0
    %493 = vmatpush1.msra.mxu0 0.0
    %494 = vmatprep.subr.mxu0 0.0
    %495 = vmatpush1.msra.mxu0 0.0
    %496 = vmatprep.subr.mxu0 0.0
    %497 = vmatpush1.msra.mxu0 0.0
    %498 = vmatprep.subr.mxu0 0.0
    %499 = vmatpush1.msra.mxu0 0.0
    %500 = vmatprep.subr.mxu0 0.0
    %501 = vmatpush1.msra.mxu0 0.0
    %502 = vmatprep.subr.mxu0 0.0
    %503 = vmatpush1.msra.mxu0 0.0
    %504 = vmatprep.subr.mxu0 0.0
    %505 = vmatpush1.msra.mxu0 0.0
    %506 = vmatprep.subr.mxu0 0.0
    %507 = vmatpush1.msra.mxu0 0.0
    %508 = vmatprep.subr.mxu0 0.0
    %509 = vmatpush1.msra.mxu0 0.0
    %510 = vmatprep.subr.mxu0 0.0
    %511 = vmatpush1.msra.mxu0 0.0
    %512 = vmatprep.subr.mxu0 0.0
    %513 = vmatpush1.msra.mxu0 0.0
    %514 = vmatprep.subr.mxu0 0.0
    %515 = vmatpush1.msra.mxu0 0.0
    %516 = vmatprep.subr.mxu0 0.0
    %517 = vmatpush1.msra.mxu0 0.0
    %518 = vmatprep.subr.mxu0 0.0
    %519 = vmatpush1.msra.mxu0 0.0
    %520 = vmatprep.subr.mxu0 0.0
    %521 = vmatpush1.msra.mxu0 0.0
    %522 = vmatprep.subr.mxu0 0.0
    %523 = vmatpush1.msra.mxu0 0.0
    %524 = vmatprep.mubr.f32.mxu0 0.0
    %525 = vmatmul.mubr.f32.gmra.mrb[0].mxu0 %v436
    %v526 = vpop.f32.mrb[0].mxu0
    %v527 = vadd.f32 %v458, %v526
    %v528 = vpop.f32.mrb[0].mxu0
    %529 = vdwg.mxu0
    %v530 = vmul.f32 %v527, 0.5
    %v531 = vtanh.pop %v530
    %v532 = vadd.f32 %v531, 1.0
    %v533 = vmul.f32 %v532, 0.5
    %534 = vst [vmem:[#allocation8] sm:$0xff] %v533
    // Predicated region
    $region34: #{tpu_custom_call.1} parent=1 // pred_check
      _
    $region35: #{tpu_custom_call.1} parent=1 // pred_check_branch
      %536 = sbr.rel (0) target = $region37
    $region36: #{tpu_custom_call.1} parent=1 // pred_region
      %s538 = ssub.s32 128, 128
      %539 = vsyncadd [#allocation4], %s538
      %s541 = sshll.u32 [#allocation8], 4
      %s542 = int_to_ptr.vmem [resolvable:$true] %s541
      %544 = dma.vmem_to_hbm [thread:$0]  %s542, 128, %s5, [#allocation4]
    $region37: #{tpu_custom_call.1} parent=1 // pred_fallthru
      _
    // Predicated region
    $region38: #{tpu_custom_call.1} parent=1 // pred_check
      _
    $region39: #{tpu_custom_call.1} parent=1 // pred_check_branch
      %546 = sbr.rel (0) target = $region41
    $region40: #{tpu_custom_call.1} parent=1 // pred_region
      %547 = dma.done [#allocation4], 128
    $region41: #{tpu_custom_call.1} parent=1 // pred_fallthru
      _
    %548 = vsyncpa [#allocation3], 1
    %549 = vsyncpa [#allocation6], 1
    %550 = vsyncpa [#allocation4], 1

</llo_original>
